<compile_context>
chip_gen: v7x
topology: tpu7x:2x2x1
jax: 0.10.0
libtpu: 0.0.40
codegen_flags: <defaults>
</compile_context>

<pallas_src>
import jax
import jax.numpy as jnp
from jax.experimental import pallas as pl
from jax.experimental.pallas import tpu as pltpu

B = 2        # graphs per batch
LQ = 8       # question tokens / nodes per graph
NS = 8       # scene-graph nodes per graph
D = 32       # hidden size
H = 64       # reasoning MLP hidden
A = 16       # number of answer classes
A_PAD = 128  # lane-dense padded logits width (sliced back to A outside)
VOCAB_Q = 50
VOCAB_SG = 40
VOCAB_PAD = 128          # packed vocab: q rows 0:50, sg rows 50:90, rest zero

NQ = B * LQ              # 16 question node rows
NSG = B * NS             # 16 scene-graph node rows
NODES = NQ + NSG         # 32 total node rows
D2 = 2 * D               # 64 packed feature lanes (q: 0:32, sg: 32:64)

# ---- weight-slab row layout (all offsets are multiples of 8 sublanes) ----
R_EMB = 0                          # [128, 64]  packed embedding table
R_WGCN = R_EMB + VOCAB_PAD         # [ 64, 32]  vstack(wq_gcn, ws_gcn)
R_WSUM = R_WGCN + D2               # [ 32, 32]  question summary weight
R_W1 = R_WSUM + D                  # [ 64, 64]  vstack(w1r, w1q)
R_W2 = R_W1 + D2                   # [ 64,128]  classifier (lanes A: zero)
R_TOTAL = R_W2 + H                 # 352 rows total

# ---- bias-slab row layout ----
BR_QGCN, BR_SGCN, BR_QSUM, BR_B1, BR_B2 = 0, 1, 2, 3, 4


# ---------------------------------------------------------------------------
# Fused Pallas kernel: full VQA forward for the whole batch, one invocation.
# ---------------------------------------------------------------------------
def _vqa_kernel(ids_ref, adj_ref, w_ref, b_ref, o_ref):
    f32 = jnp.float32

    # ---- fused embedding gather: one-hot @ packed table (one MXU push) ----
    ids = ids_ref[...]                                              # [32, 1] i32
    iota = jax.lax.broadcasted_iota(jnp.int32, (NODES, VOCAB_PAD), 1)
    onehot = (iota == ids).astype(f32)                              # [32, 128]
    x_all = jnp.dot(onehot, w_ref[R_EMB:R_EMB + VOCAB_PAD, 0:D2],
                    preferred_element_type=f32)                     # [32, 64]

    # ---- fused question + scene-graph GCN: relu(A_bd @ X @ W_stack + b) ----
    h = jnp.dot(adj_ref[...], x_all, preferred_element_type=f32)    # [32, 64]
    h = jnp.dot(h, w_ref[R_WGCN:R_WGCN + D2, 0:D],
                preferred_element_type=f32)                         # [32, 32]
    row = jax.lax.broadcasted_iota(jnp.int32, (NODES, D), 0)
    b_gcn = jnp.where(row < NQ, b_ref[BR_QGCN:BR_QGCN + 1, 0:D],
                      b_ref[BR_SGCN:BR_SGCN + 1, 0:D])              # [32, 32]
    hid = jnp.maximum(h + b_gcn, 0.0)                               # [32, 32]

    words3 = hid[0:NQ].reshape(B, LQ, D)                            # [B, LQ, D]
    kn3 = hid[NQ:NODES].reshape(B, NS, D)                           # [B, NS, D]

    # ---- question summary: tanh(mean(words) @ W + b) ----
    q_mean = jnp.mean(words3, axis=1)                               # [B, D]
    question = jnp.tanh(
        jnp.dot(q_mean, w_ref[R_WSUM:R_WSUM + D, 0:D],
                preferred_element_type=f32)
        + b_ref[BR_QSUM:BR_QSUM + 1, 0:D])                          # [B, D]

    scale = 1.0 / (D ** 0.5)

    # ---- control attention over question words (VPU mul + reduce) ----
    c_scores = jnp.sum(words3 * question[:, None, :], axis=-1,
                       keepdims=True) * scale                       # [B, LQ, 1]
    c_att = jax.nn.softmax(c_scores, axis=1)
    control = jnp.sum(c_att * words3, axis=1)                       # [B, D]

    # ---- read attention over scene-graph knowledge ----
    r_scores = jnp.sum(kn3 * control[:, None, :], axis=-1,
                       keepdims=True) * scale                       # [B, NS, 1]
    r_att = jax.nn.softmax(r_scores, axis=1)
    read = jnp.sum(r_att * kn3, axis=1)                             # [B, D]

    # ---- reasoning MLP: [read ; question] -> single K=64 matmul ----
    rq = jnp.concatenate([read, question], axis=1)                  # [B, 64]
    h1 = jnp.maximum(
        jnp.dot(rq, w_ref[R_W1:R_W1 + D2, 0:H], preferred_element_type=f32)
        + b_ref[BR_B1:BR_B1 + 1, 0:H], 0.0)                         # [B, H]
    o_ref[...] = (jnp.dot(h1, w_ref[R_W2:R_W2 + H, :],
                          preferred_element_type=f32)
                  + b_ref[BR_B2:BR_B2 + 1, :])                      # [B, 128]


def _vmem_spec():
    return pl.BlockSpec(memory_space=pltpu.MemorySpace.VMEM)


_COST = pl.CostEstimate(
    flops=2 * (NODES * VOCAB_PAD * D2        # one-hot embedding matmul
               + NODES * NODES * D2          # adjacency matmul
               + NODES * D2 * D              # GCN weight matmul
               + B * D * D                   # question summary
               + B * D2 * H                  # fused reasoning layer 1
               + B * H * A_PAD),             # classifier
    transcendentals=B * D + B * LQ + B * NS,
    bytes_accessed=4 * (NODES                # ids (int32)
                        + NODES * NODES      # block-diag adjacency
                        + R_TOTAL * A_PAD    # weight slab
                        + 8 * A_PAD          # bias slab
                        + B * A_PAD),        # padded logits
)


# ---------------------------------------------------------------------------
# One-time parameter packing (hoisted out of the per-call forward).
# ---------------------------------------------------------------------------
def prepare_params(params):
    w = jnp.zeros((R_TOTAL, A_PAD), jnp.float32)
    # packed embedding table: q vocab in lanes 0:D, sg vocab (offset) in D:2D
    w = w.at[R_EMB:R_EMB + VOCAB_Q, 0:D].set(params["emb_q"])
    w = w.at[R_EMB + VOCAB_Q:R_EMB + VOCAB_Q + VOCAB_SG, D:D2].set(params["emb_sg"])
    # stacked GCN weight: wq contracts lanes 0:D, ws contracts lanes D:2D
    w = w.at[R_WGCN:R_WGCN + D, 0:D].set(params["wq_gcn"])
    w = w.at[R_WGCN + D:R_WGCN + D2, 0:D].set(params["ws_gcn"])
    # question summary weight
    w = w.at[R_WSUM:R_WSUM + D, 0:D].set(params["wq_sum"])
    # fused reasoning layer-1 weight: [read ; question] -> H
    w = w.at[R_W1:R_W1 + D, 0:H].set(params["w1r"])
    w = w.at[R_W1 + D:R_W1 + D2, 0:H].set(params["w1q"])
    # classifier, zero-padded to 128 output lanes (lane-dense store in-kernel)
    w = w.at[R_W2:R_W2 + H, 0:A].set(params["w2"])

    b = jnp.zeros((8, A_PAD), jnp.float32)
    b = b.at[BR_QGCN, 0:D].set(params["bq_gcn"][0])
    b = b.at[BR_SGCN, 0:D].set(params["bs_gcn"][0])
    b = b.at[BR_QSUM, 0:D].set(params["bq_sum"][0])
    b = b.at[BR_B1, 0:H].set(params["b1"][0])
    b = b.at[BR_B2, 0:A].set(params["b2"][0])
    return {"w_slab": w, "b_slab": b}


def _block_diag_all(q_adj, sg_adj):
    """Per-graph adjacencies -> one [NODES, NODES] block-diagonal matrix
    (q blocks first, then sg blocks, matching the node-row packing)."""
    eye = jnp.eye(B, dtype=jnp.float32)
    qbd = jnp.einsum("bc,bij->bicj", eye, q_adj).reshape(NQ, NQ)
    sbd = jnp.einsum("bc,bij->bicj", eye, sg_adj).reshape(NSG, NSG)
    a = jnp.zeros((NODES, NODES), jnp.float32)
    a = a.at[:NQ, :NQ].set(qbd)
    a = a.at[NQ:, NQ:].set(sbd)
    return a


# ---------------------------------------------------------------------------
# VQA forward: one tiny wrapper fusion (ids + adjacency glue) + one kernel.
# ---------------------------------------------------------------------------
@jax.jit
def vqa_forward(prepped, q_ids, q_adj, sg_ids, sg_adj):
    # combined node ids; sg ids offset into the packed embedding table
    ids_all = jnp.concatenate(
        [q_ids.reshape(-1), sg_ids.reshape(-1) + VOCAB_Q]
    ).astype(jnp.int32).reshape(NODES, 1)
    adj_bd = _block_diag_all(q_adj, sg_adj)                         # [32, 32]

    logits_pad = pl.pallas_call(
        _vqa_kernel,
        out_shape=jax.ShapeDtypeStruct((B, A_PAD), jnp.float32),
        in_specs=[_vmem_spec()] * 4,
        out_specs=_vmem_spec(),
        cost_estimate=_COST,
    )(ids_all, adj_bd, prepped["w_slab"], prepped["b_slab"])
    return logits_pad[:, :A]                                        # [B, A]


# ---------------------------------------------------------------------------
# Pure-JAX reference (uses the original, unpacked parameters).
# ---------------------------------------------------------------------------
def vqa_reference(params, q_ids, q_adj, sg_ids, sg_adj):
    q_x = jnp.take(params["emb_q"], q_ids, axis=0)
    sg_x = jnp.take(params["emb_sg"], sg_ids, axis=0)
    words = jnp.maximum(
        jnp.einsum("bnm,bmd->bnd", q_adj, q_x) @ params["wq_gcn"] + params["bq_gcn"], 0.0)
    question = jnp.tanh(words.mean(axis=1) @ params["wq_sum"] + params["bq_sum"])
    knowledge = jnp.maximum(
        jnp.einsum("bnm,bmd->bnd", sg_adj, sg_x) @ params["ws_gcn"] + params["bs_gcn"], 0.0)
    scale = 1.0 / jnp.sqrt(jnp.float32(D))
    c_att = jax.nn.softmax(jnp.einsum("bld,bd->bl", words, question) * scale, axis=-1)
    control = jnp.einsum("bl,bld->bd", c_att, words)
    r_att = jax.nn.softmax(jnp.einsum("bnd,bd->bn", knowledge, control) * scale, axis=-1)
    read = jnp.einsum("bn,bnd->bd", r_att, knowledge)
    h = jnp.maximum(read @ params["w1r"] + question @ params["w1q"] + params["b1"], 0.0)
    return h @ params["w2"] + params["b2"]


def make_params(key):
    ks = jax.random.split(key, 12)
    s = 0.1
    return {
        "emb_q": s * jax.random.normal(ks[0], (VOCAB_Q, D), jnp.float32),
        "emb_sg": s * jax.random.normal(ks[1], (VOCAB_SG, D), jnp.float32),
        "wq_gcn": s * jax.random.normal(ks[2], (D, D), jnp.float32),
        "bq_gcn": s * jax.random.normal(ks[8], (1, D), jnp.float32),
        "wq_sum": s * jax.random.normal(ks[3], (D, D), jnp.float32),
        "bq_sum": s * jax.random.normal(ks[9], (1, D), jnp.float32),
        "ws_gcn": s * jax.random.normal(ks[4], (D, D), jnp.float32),
        "bs_gcn": s * jax.random.normal(ks[10], (1, D), jnp.float32),
        "w1r": s * jax.random.normal(ks[5], (D, H), jnp.float32),
        "w1q": s * jax.random.normal(ks[6], (D, H), jnp.float32),
        "b1": s * jax.random.normal(ks[11], (1, H), jnp.float32),
        "w2": s * jax.random.normal(ks[7], (H, A), jnp.float32),
        "b2": jnp.zeros((1, A), jnp.float32),
    }


def chain_adjacency(n):
    a = jnp.eye(n) + jnp.eye(n, k=1) + jnp.eye(n, k=-1)
    return a / a.sum(axis=-1, keepdims=True)


if __name__ == "__main__":
    key = jax.random.PRNGKey(0)
    kp, kq, ks = jax.random.split(key, 3)
    params = make_params(kp)
    prepped = prepare_params(params)            # one-time weight/bias packing

    q_ids = jax.random.randint(kq, (B, LQ), 0, VOCAB_Q, dtype=jnp.int32)
    sg_ids = jax.random.randint(ks, (B, NS), 0, VOCAB_SG, dtype=jnp.int32)
    q_adj = jnp.broadcast_to(chain_adjacency(LQ), (B, LQ, LQ)).astype(jnp.float32)
    sg_adj = jnp.broadcast_to(chain_adjacency(NS), (B, NS, NS)).astype(jnp.float32)

    logits = vqa_forward(prepped, q_ids, q_adj, sg_ids, sg_adj)
    jax.block_until_ready(logits)

    ref = vqa_reference(params, q_ids, q_adj, sg_ids, sg_adj)
    assert logits.shape == (B, A)
    # Tolerance covers TPU default bf16-pass fp32 matmul precision differences
    # between the in-kernel MXU path and the XLA reference.
    assert jnp.allclose(logits, ref, rtol=2e-2, atol=2e-2)

    print("KERNEL_OK")
</pallas_src>

<mosaic_0001>
module attributes {stable_mosaic.version = 11 : i64} {
  func.func @_vqa_kernel(%arg0: memref<32x1xi32, #tpu.memory_space<vmem>>, %arg1: memref<32x32xf32, #tpu.memory_space<vmem>>, %arg2: memref<352x128xf32, #tpu.memory_space<vmem>>, %arg3: memref<8x128xf32, #tpu.memory_space<vmem>>, %arg4: memref<2x128xf32, #tpu.memory_space<vmem>>) attributes {dimension_semantics = [], scalar_prefetch = 0 : i64, scratch_operands = 0 : i64, tpu.core_type = #tpu.core_type<tc>} {
    %c0 = arith.constant 0 : index
    %c0_0 = arith.constant 0 : index
    %0 = vector.load %arg0[%c0, %c0_0] : memref<32x1xi32, #tpu.memory_space<vmem>>, vector<32x1xi32>
    %1 = tpu.iota {dimensions = array<i32: 1>} : vector<32x128xi32>
    %2 = vector.broadcast %0 : vector<32x1xi32> to vector<32x128xi32>
    %3 = arith.cmpi eq, %1, %2 : vector<32x128xi32>
    %4 = arith.extui %3 : vector<32x128xi1> to vector<32x128xi32>
    %5 = arith.sitofp %4 : vector<32x128xi32> to vector<32x128xf32>
    %c0_1 = arith.constant 0 : index
    %c0_2 = arith.constant 0 : index
    %6 = vector.load %arg2[%c0_1, %c0_2] : memref<352x128xf32, #tpu.memory_space<vmem>>, vector<128x64xf32>
    %cst = arith.constant dense<0.000000e+00> : vector<32x64xf32>
    %7 = tpu.matmul %5, %6, %cst {dimension_numbers = #tpu.dot_dimension_numbers<[1], [0], [0], [1], [0, 0, 1, 1], [], []>} : vector<32x128xf32>, vector<128x64xf32>, vector<32x64xf32> -> vector<32x64xf32>
    %c0_3 = arith.constant 0 : index
    %c0_4 = arith.constant 0 : index
    %8 = vector.load %arg1[%c0_3, %c0_4] : memref<32x32xf32, #tpu.memory_space<vmem>>, vector<32x32xf32>
    %cst_5 = arith.constant dense<0.000000e+00> : vector<32x64xf32>
    %9 = tpu.matmul %8, %7, %cst_5 {dimension_numbers = #tpu.dot_dimension_numbers<[1], [0], [0], [1], [0, 0, 1, 1], [], []>} : vector<32x32xf32>, vector<32x64xf32>, vector<32x64xf32> -> vector<32x64xf32>
    %c128 = arith.constant 128 : index
    %c0_6 = arith.constant 0 : index
    %10 = vector.load %arg2[%c128, %c0_6] : memref<352x128xf32, #tpu.memory_space<vmem>>, vector<64x32xf32>
    %cst_7 = arith.constant dense<0.000000e+00> : vector<32x32xf32>
    %11 = tpu.matmul %9, %10, %cst_7 {dimension_numbers = #tpu.dot_dimension_numbers<[1], [0], [0], [1], [0, 0, 1, 1], [], []>} : vector<32x64xf32>, vector<64x32xf32>, vector<32x32xf32> -> vector<32x32xf32>
    %12 = tpu.iota {dimensions = array<i32: 0>} : vector<32x32xi32>
    %c16_i32 = arith.constant 16 : i32
    %13 = vector.broadcast %c16_i32 : i32 to vector<32x32xi32>
    %14 = arith.cmpi slt, %12, %13 : vector<32x32xi32>
    %c0_8 = arith.constant 0 : index
    %c0_9 = arith.constant 0 : index
    %15 = vector.load %arg3[%c0_8, %c0_9] : memref<8x128xf32, #tpu.memory_space<vmem>>, vector<1x32xf32>
    %c1 = arith.constant 1 : index
    %c0_10 = arith.constant 0 : index
    %16 = vector.load %arg3[%c1, %c0_10] : memref<8x128xf32, #tpu.memory_space<vmem>>, vector<1x32xf32>
    %17 = vector.shape_cast %15 : vector<1x32xf32> to vector<1x32xf32>
    %18 = vector.broadcast %17 : vector<1x32xf32> to vector<32x32xf32>
    %19 = vector.shape_cast %16 : vector<1x32xf32> to vector<1x32xf32>
    %20 = vector.broadcast %19 : vector<1x32xf32> to vector<32x32xf32>
    %21 = arith.select %14, %18, %20 : vector<32x32xi1>, vector<32x32xf32>
    %22 = arith.addf %11, %21 : vector<32x32xf32>
    %cst_11 = arith.constant 0.000000e+00 : f32
    %23 = vector.broadcast %cst_11 : f32 to vector<32x32xf32>
    %24 = arith.maximumf %22, %23 : vector<32x32xf32>
    %25 = vector.extract_strided_slice %24 {offsets = [0, 0], sizes = [16, 32], strides = [1, 1]} : vector<32x32xf32> to vector<16x32xf32>
    %26 = vector.shape_cast %25 : vector<16x32xf32> to vector<2x8x32xf32>
    %27 = vector.extract_strided_slice %24 {offsets = [16, 0], sizes = [16, 32], strides = [1, 1]} : vector<32x32xf32> to vector<16x32xf32>
    %28 = vector.shape_cast %27 : vector<16x32xf32> to vector<2x8x32xf32>
    %cst_12 = arith.constant dense<0.000000e+00> : vector<2x32xf32>
    %29 = vector.multi_reduction <add>, %26, %cst_12 [1] : vector<2x8x32xf32> to vector<2x32xf32>
    %cst_13 = arith.constant 8.000000e+00 : f32
    %30 = vector.broadcast %cst_13 : f32 to vector<2x32xf32>
    %31 = arith.divf %29, %30 : vector<2x32xf32>
    %c192 = arith.constant 192 : index
    %c0_14 = arith.constant 0 : index
    %32 = vector.load %arg2[%c192, %c0_14] : memref<352x128xf32, #tpu.memory_space<vmem>>, vector<32x32xf32>
    %cst_15 = arith.constant dense<0.000000e+00> : vector<2x32xf32>
    %33 = tpu.matmul %31, %32, %cst_15 {dimension_numbers = #tpu.dot_dimension_numbers<[1], [0], [0], [1], [0, 0, 1, 1], [], []>} : vector<2x32xf32>, vector<32x32xf32>, vector<2x32xf32> -> vector<2x32xf32>
    %c2 = arith.constant 2 : index
    %c0_16 = arith.constant 0 : index
    %34 = vector.load %arg3[%c2, %c0_16] : memref<8x128xf32, #tpu.memory_space<vmem>>, vector<1x32xf32>
    %35 = vector.broadcast %34 : vector<1x32xf32> to vector<2x32xf32>
    %36 = arith.addf %33, %35 : vector<2x32xf32>
    %37 = math.tanh %36 : vector<2x32xf32>
    %38 = vector.shape_cast %37 : vector<2x32xf32> to vector<2x1x32xf32>
    %39 = vector.broadcast %38 : vector<2x1x32xf32> to vector<2x8x32xf32>
    %40 = arith.mulf %26, %39 : vector<2x8x32xf32>
    %cst_17 = arith.constant dense<0.000000e+00> : vector<2x8xf32>
    %41 = vector.multi_reduction <add>, %40, %cst_17 [2] : vector<2x8x32xf32> to vector<2x8xf32>
    %42 = vector.shape_cast %41 : vector<2x8xf32> to vector<2x8x1xf32>
    %cst_18 = arith.constant 0.176776692 : f32
    %43 = vector.broadcast %cst_18 : f32 to vector<2x8x1xf32>
    %44 = arith.mulf %42, %43 : vector<2x8x1xf32>
    %cst_19 = arith.constant dense<0xFF800000> : vector<2x1xf32>
    %45 = vector.multi_reduction <maximumf>, %44, %cst_19 [1] : vector<2x8x1xf32> to vector<2x1xf32>
    %cst_20 = arith.constant 0xFF800000 : f32
    %46 = vector.broadcast %cst_20 : f32 to vector<2x1xf32>
    %47 = arith.maximumf %46, %45 : vector<2x1xf32>
    %48 = vector.shape_cast %47 : vector<2x1xf32> to vector<2x1x1xf32>
    %49 = vector.broadcast %48 : vector<2x1x1xf32> to vector<2x8x1xf32>
    %50 = arith.subf %44, %49 : vector<2x8x1xf32>
    %51 = math.exp %50 : vector<2x8x1xf32>
    %cst_21 = arith.constant dense<0.000000e+00> : vector<2x1xf32>
    %52 = vector.multi_reduction <add>, %51, %cst_21 [1] : vector<2x8x1xf32> to vector<2x1xf32>
    %53 = vector.shape_cast %52 : vector<2x1xf32> to vector<2x1x1xf32>
    %54 = vector.broadcast %53 : vector<2x1x1xf32> to vector<2x8x1xf32>
    %55 = arith.divf %51, %54 : vector<2x8x1xf32>
    %56 = vector.broadcast %55 : vector<2x8x1xf32> to vector<2x8x32xf32>
    %57 = arith.mulf %56, %26 : vector<2x8x32xf32>
    %cst_22 = arith.constant dense<0.000000e+00> : vector<2x32xf32>
    %58 = vector.multi_reduction <add>, %57, %cst_22 [1] : vector<2x8x32xf32> to vector<2x32xf32>
    %59 = vector.shape_cast %58 : vector<2x32xf32> to vector<2x1x32xf32>
    %60 = vector.broadcast %59 : vector<2x1x32xf32> to vector<2x8x32xf32>
    %61 = arith.mulf %28, %60 : vector<2x8x32xf32>
    %cst_23 = arith.constant dense<0.000000e+00> : vector<2x8xf32>
    %62 = vector.multi_reduction <add>, %61, %cst_23 [2] : vector<2x8x32xf32> to vector<2x8xf32>
    %63 = vector.shape_cast %62 : vector<2x8xf32> to vector<2x8x1xf32>
    %cst_24 = arith.constant 0.176776692 : f32
    %64 = vector.broadcast %cst_24 : f32 to vector<2x8x1xf32>
    %65 = arith.mulf %63, %64 : vector<2x8x1xf32>
    %cst_25 = arith.constant dense<0xFF800000> : vector<2x1xf32>
    %66 = vector.multi_reduction <maximumf>, %65, %cst_25 [1] : vector<2x8x1xf32> to vector<2x1xf32>
    %cst_26 = arith.constant 0xFF800000 : f32
    %67 = vector.broadcast %cst_26 : f32 to vector<2x1xf32>
    %68 = arith.maximumf %67, %66 : vector<2x1xf32>
    %69 = vector.shape_cast %68 : vector<2x1xf32> to vector<2x1x1xf32>
    %70 = vector.broadcast %69 : vector<2x1x1xf32> to vector<2x8x1xf32>
    %71 = arith.subf %65, %70 : vector<2x8x1xf32>
    %72 = math.exp %71 : vector<2x8x1xf32>
    %cst_27 = arith.constant dense<0.000000e+00> : vector<2x1xf32>
    %73 = vector.multi_reduction <add>, %72, %cst_27 [1] : vector<2x8x1xf32> to vector<2x1xf32>
    %74 = vector.shape_cast %73 : vector<2x1xf32> to vector<2x1x1xf32>
    %75 = vector.broadcast %74 : vector<2x1x1xf32> to vector<2x8x1xf32>
    %76 = arith.divf %72, %75 : vector<2x8x1xf32>
    %77 = vector.broadcast %76 : vector<2x8x1xf32> to vector<2x8x32xf32>
    %78 = arith.mulf %77, %28 : vector<2x8x32xf32>
    %cst_28 = arith.constant dense<0.000000e+00> : vector<2x32xf32>
    %79 = vector.multi_reduction <add>, %78, %cst_28 [1] : vector<2x8x32xf32> to vector<2x32xf32>
    %80 = tpu.concatenate %79, %37 in 1 : vector<2x32xf32>, vector<2x32xf32> -> vector<2x64xf32>
    %c224 = arith.constant 224 : index
    %c0_29 = arith.constant 0 : index
    %81 = vector.load %arg2[%c224, %c0_29] : memref<352x128xf32, #tpu.memory_space<vmem>>, vector<64x64xf32>
    %cst_30 = arith.constant dense<0.000000e+00> : vector<2x64xf32>
    %82 = tpu.matmul %80, %81, %cst_30 {dimension_numbers = #tpu.dot_dimension_numbers<[1], [0], [0], [1], [0, 0, 1, 1], [], []>} : vector<2x64xf32>, vector<64x64xf32>, vector<2x64xf32> -> vector<2x64xf32>
    %c3 = arith.constant 3 : index
    %c0_31 = arith.constant 0 : index
    %83 = vector.load %arg3[%c3, %c0_31] : memref<8x128xf32, #tpu.memory_space<vmem>>, vector<1x64xf32>
    %84 = vector.broadcast %83 : vector<1x64xf32> to vector<2x64xf32>
    %85 = arith.addf %82, %84 : vector<2x64xf32>
    %cst_32 = arith.constant 0.000000e+00 : f32
    %86 = vector.broadcast %cst_32 : f32 to vector<2x64xf32>
    %87 = arith.maximumf %85, %86 : vector<2x64xf32>
    %c288 = arith.constant 288 : index
    %c0_33 = arith.constant 0 : index
    %88 = vector.load %arg2[%c288, %c0_33] : memref<352x128xf32, #tpu.memory_space<vmem>>, vector<64x128xf32>
    %cst_34 = arith.constant dense<0.000000e+00> : vector<2x128xf32>
    %89 = tpu.matmul %87, %88, %cst_34 {dimension_numbers = #tpu.dot_dimension_numbers<[1], [0], [0], [1], [0, 0, 1, 1], [], []>} : vector<2x64xf32>, vector<64x128xf32>, vector<2x128xf32> -> vector<2x128xf32>
    %c4 = arith.constant 4 : index
    %c0_35 = arith.constant 0 : index
    %90 = vector.load %arg3[%c4, %c0_35] : memref<8x128xf32, #tpu.memory_space<vmem>>, vector<1x128xf32>
    %91 = vector.broadcast %90 : vector<1x128xf32> to vector<2x128xf32>
    %92 = arith.addf %89, %91 : vector<2x128xf32>
    %c0_36 = arith.constant 0 : index
    %c0_37 = arith.constant 0 : index
    %93 = vector.load %arg4[%c0_36, %c0_37] : memref<2x128xf32, #tpu.memory_space<vmem>>, vector<2x128xf32>
    tpu.vector_store %arg4[%c0_36, %c0_37], %92 {strides = array<i32>} : memref<2x128xf32, #tpu.memory_space<vmem>>, vector<2x128xf32>,
    return
  }
}

</mosaic_0001>

<llo_original>
// kernel: vqa_forward.1
$region0: #{vqa_forward.1}
  #allocation0 [shape = 'u32[]', space=smem, size = 0x4, offset = 0x4, fixed_abs, tag = 'smem constant byte address 0x4 - core index']
  #allocation1 [shape = 'u32[144,128]{1,0:T(1,128)}', space=vmem, size = 0x12000, scoped, tag = 'internal scratch']
  %s0 = inlined_call_operand.vmem [shape: s32[32,1], index: 0, kind: input, shape index: {}]
  %s1 = inlined_call_operand.vmem [shape: f32[32,32], index: 1, kind: input, shape index: {}]
  %s2 = inlined_call_operand.hbm [shape: f32[352,128], index: 2, kind: input, shape index: {}]
  %s3 = inlined_call_operand.vmem [shape: f32[8,128], index: 3, kind: input, shape index: {}]
  %s4 = inlined_call_operand.hbm [shape: f32[2,128], index: 4, kind: output, shape index: {}]
  %s5 = sld [smem:[#allocation0]]
  $region30: #{vqa_forward.1} parent=0
    _
  %s7 = ssub.s32 1, %s5
  %s8 = scalar_select 0, %s7, %s5
  $region1: #{vqa_forward.1} parent=0
    #allocation2 [shape = 'u8[180224]{0}', space=vmem, size = 0x2c000, scoped, tag = 'input window, operand 2, single buffered']
    #allocation3 [shape = 's32[1]{0}', space=sflag, size = 0x4, scoped, tag = 'scoped memory for vqa_forward.1']
    #allocation4 [shape = 's32[1]{0}', space=sflag, size = 0x4, scoped, tag = 'scoped memory for vqa_forward.1']
    #allocation5 [shape = 'u8[1024]{0}', space=vmem, size = 0x400, scoped, tag = 'output window, operand 0, single buffered']
    %9 = vsyncpa [#allocation3], 0
    %10 = vsyncpa [#allocation4], 0
    // Predicated region
    $region2: #{vqa_forward.1} parent=1 // pred_check
      _
    $region3: #{vqa_forward.1} parent=1 // pred_check_branch
      %12 = sbr.rel (0) target = $region5
    $region4: #{vqa_forward.1} parent=1 // pred_region
      _
    $region5: #{vqa_forward.1} parent=1 // pred_fallthru
      _
    // Predicated region
    $region6: #{vqa_forward.1} parent=1 // pred_check
      _
    $region7: #{vqa_forward.1} parent=1 // pred_check_branch
      %14 = sbr.rel (0) target = $region9
    $region8: #{vqa_forward.1} parent=1 // pred_region
      _
    $region9: #{vqa_forward.1} parent=1 // pred_fallthru
      _
    // Predicated region
    $region10: #{vqa_forward.1} parent=1 // pred_check
      _
    $region11: #{vqa_forward.1} parent=1 // pred_check_branch
      %16 = sbr.rel (0) target = $region13
    $region12: #{vqa_forward.1} parent=1 // pred_region
      %s18 = ssub.s32 5632, 5632
      %19 = vsyncadd [#allocation3], %s18
      %s20 = sshll.u32 [#allocation2], 4
      %s21 = int_to_ptr.vmem [resolvable:$true] %s20
      %26 = dma.hbm_to_vmem [thread:$0]  %s2, 5632, %s21, [#allocation3], 128, 128, 8
    $region13: #{vqa_forward.1} parent=1 // pred_fallthru
      _
    // Predicated region
    $region14: #{vqa_forward.1} parent=1 // pred_check
      _
    $region15: #{vqa_forward.1} parent=1 // pred_check_branch
      %28 = sbr.rel (0) target = $region17
    $region16: #{vqa_forward.1} parent=1 // pred_region
      _
    $region17: #{vqa_forward.1} parent=1 // pred_fallthru
      _
    // Predicated region
    $region18: #{vqa_forward.1} parent=1 // pred_check
      _
    $region19: #{vqa_forward.1} parent=1 // pred_check_branch
      %30 = sbr.rel (0) target = $region21
    $region20: #{vqa_forward.1} parent=1 // pred_region
      %31 = dma.done [#allocation3], 5632
    $region21: #{vqa_forward.1} parent=1 // pred_fallthru
      _
    %v32 = vld [vmem:[%s0] sm:$0xff]
    %v33 = vld [vmem:[%s0 + $0x8] sm:$0xff]
    %v34 = vld [vmem:[%s0 + $0x10] sm:$0xff]
    %v35 = vld [vmem:[%s0 + $0x18] sm:$0xff]
    %v36 = vlaneseq
    %v37 = vand.u32 %v36, 127
    %38 = vset.pattern.permute.xlu0 0
    %39 = vperm.xlu0 %38, %v32
    %v40 = vpop.permute.xlu0 %39
    %41 = vset.pattern.permute.xlu0 0
    %42 = vperm.xlu0 %41, %v33
    %v43 = vpop.permute.xlu0 %42
    %44 = vset.pattern.permute.xlu0 0
    %45 = vperm.xlu0 %44, %v34
    %v46 = vpop.permute.xlu0 %45
    %47 = vset.pattern.permute.xlu0 0
    %48 = vperm.xlu0 %47, %v35
    %v49 = vpop.permute.xlu0 %48
    %vm50 = vcmp.eq.s32.totalorder %v37, %v40
    %vm51 = vcmp.eq.s32.totalorder %v37, %v43
    %vm52 = vcmp.eq.s32.totalorder %v37, %v46
    %vm53 = vcmp.eq.s32.totalorder %v37, %v49
    %v54 = vsel %vm50, 1, 0
    %v55 = vsel %vm51, 1, 0
    %v56 = vsel %vm52, 1, 0
    %v57 = vsel %vm53, 1, 0
    %v58 = vcvt.s32.f32 %v54
    %v59 = vcvt.s32.f32 %v55
    %v60 = vcvt.s32.f32 %v56
    %v61 = vcvt.s32.f32 %v57
    %v62 = vld [vmem:[#allocation2] sm:$0xff]
    %v63 = vld [vmem:[#allocation2 + $0x8] sm:$0xff]
    %v64 = vld [vmem:[#allocation2 + $0x10] sm:$0xff]
    %v65 = vld [vmem:[#allocation2 + $0x18] sm:$0xff]
    %v66 = vld [vmem:[#allocation2 + $0x20] sm:$0xff]
    %v67 = vld [vmem:[#allocation2 + $0x28] sm:$0xff]
    %v68 = vld [vmem:[#allocation2 + $0x30] sm:$0xff]
    %v69 = vld [vmem:[#allocation2 + $0x38] sm:$0xff]
    %v70 = vld [vmem:[#allocation2 + $0x40] sm:$0xff]
    %v71 = vld [vmem:[#allocation2 + $0x48] sm:$0xff]
    %v72 = vld [vmem:[#allocation2 + $0x50] sm:$0xff]
    %v73 = vld [vmem:[#allocation2 + $0x58] sm:$0xff]
    %v74 = vld [vmem:[#allocation2 + $0x60] sm:$0xff]
    %v75 = vld [vmem:[#allocation2 + $0x68] sm:$0xff]
    %v76 = vld [vmem:[#allocation2 + $0x70] sm:$0xff]
    %v77 = vld [vmem:[#allocation2 + $0x78] sm:$0xff]
    %78 = vmatprep.subr.mxu0 0.0
    %79 = vmatpush1.msra.mxu0 %v62
    %80 = vmatprep.subr.mxu0 0.0
    %81 = vmatpush1.msra.mxu0 %v63
    %82 = vmatprep.subr.mxu0 0.0
    %83 = vmatpush1.msra.mxu0 %v64
    %84 = vmatprep.subr.mxu0 0.0
    %85 = vmatpush1.msra.mxu0 %v65
    %86 = vmatprep.subr.mxu0 0.0
    %87 = vmatpush1.msra.mxu0 %v66
    %88 = vmatprep.subr.mxu0 0.0
    %89 = vmatpush1.msra.mxu0 %v67
    %90 = vmatprep.subr.mxu0 0.0
    %91 = vmatpush1.msra.mxu0 %v68
    %92 = vmatprep.subr.mxu0 0.0
    %93 = vmatpush1.msra.mxu0 %v69
    %94 = vmatprep.subr.mxu0 0.0
    %95 = vmatpush1.msra.mxu0 %v70
    %96 = vmatprep.subr.mxu0 0.0
    %97 = vmatpush1.msra.mxu0 %v71
    %98 = vmatprep.subr.mxu0 0.0
    %99 = vmatpush1.msra.mxu0 %v72
    %100 = vmatprep.subr.mxu0 0.0
    %101 = vmatpush1.msra.mxu0 %v73
    %102 = vmatprep.subr.mxu0 0.0
    %103 = vmatpush1.msra.mxu0 %v74
    %104 = vmatprep.subr.mxu0 0.0
    %105 = vmatpush1.msra.mxu0 %v75
    %106 = vmatprep.subr.mxu0 0.0
    %107 = vmatpush1.msra.mxu0 %v76
    %108 = vmatprep.subr.mxu0 0.0
    %109 = vmatpush1.msra.mxu0 %v77
    %110 = vmatprep.subr.mxu0 0.0
    %111 = vmatpush1.msra.mxu0 0.0
    %112 = vmatprep.subr.mxu0 0.0
    %113 = vmatpush1.msra.mxu0 0.0
    %114 = vmatprep.subr.mxu0 0.0
    %115 = vmatpush1.msra.mxu0 0.0
    %116 = vmatprep.subr.mxu0 0.0
    %117 = vmatpush1.msra.mxu0 0.0
    %118 = vmatprep.subr.mxu0 0.0
    %119 = vmatpush1.msra.mxu0 0.0
    %120 = vmatprep.subr.mxu0 0.0
    %121 = vmatpush1.msra.mxu0 0.0
    %122 = vmatprep.subr.mxu0 0.0
    %123 = vmatpush1.msra.mxu0 0.0
    %124 = vmatprep.subr.mxu0 0.0
    %125 = vmatpush1.msra.mxu0 0.0
    %126 = vmatprep.subr.mxu0 0.0
    %127 = vmatpush1.msra.mxu0 0.0
    %128 = vmatprep.subr.mxu0 0.0
    %129 = vmatpush1.msra.mxu0 0.0
    %130 = vmatprep.subr.mxu0 0.0
    %131 = vmatpush1.msra.mxu0 0.0
    %132 = vmatprep.subr.mxu0 0.0
    %133 = vmatpush1.msra.mxu0 0.0
    %134 = vmatprep.subr.mxu0 0.0
    %135 = vmatpush1.msra.mxu0 0.0
    %136 = vmatprep.subr.mxu0 0.0
    %137 = vmatpush1.msra.mxu0 0.0
    %138 = vmatprep.subr.mxu0 0.0
    %139 = vmatpush1.msra.mxu0 0.0
    %140 = vmatprep.subr.mxu0 0.0
    %141 = vmatpush1.msra.mxu0 0.0
    %142 = vmatprep.mubr.f32.mxu0 0.0
    %143 = vmatmul.mubr.f32.gmra.mrb[0].mxu0 %v58
    %v144 = vpop.f32.mrb[0].mxu0
    %v145 = vadd.f32 0.0, %v144
    %v146 = vpop.f32.mrb[0].mxu0
    %147 = vmatprep.mubr.f32.mxu0 0.0
    %148 = vmatmul.mubr.f32.gmra.mrb[0].mxu0 %v59
    %v149 = vpop.f32.mrb[0].mxu0
    %v150 = vadd.f32 0.0, %v149
    %v151 = vpop.f32.mrb[0].mxu0
    %152 = vmatprep.mubr.f32.mxu0 0.0
    %153 = vmatmul.mubr.f32.gmra.mrb[0].mxu0 %v60
    %v154 = vpop.f32.mrb[0].mxu0
    %v155 = vadd.f32 0.0, %v154
    %v156 = vpop.f32.mrb[0].mxu0
    %157 = vmatprep.mubr.f32.mxu0 0.0
    %158 = vmatmul.mubr.f32.gmra.mrb[0].mxu0 %v61
    %v159 = vpop.f32.mrb[0].mxu0
    %v160 = vadd.f32 0.0, %v159
    %v161 = vpop.f32.mrb[0].mxu0
    %162 = vdwg.mxu0
    %v163 = vld [vmem:[%s1] sm:$0xff]
    %v164 = vld [vmem:[%s1 + $0x8] sm:$0xff]
    %v165 = vld [vmem:[%s1 + $0x10] sm:$0xff]
    %v166 = vld [vmem:[%s1 + $0x18] sm:$0xff]
    %vm167 = vcmask 261120
    %v169 = vsel %vm167, %v163, 0
    %v172 = vsel %vm167, %v164, 0
    %v175 = vsel %vm167, %v165, 0
    %v178 = vsel %vm167, %v166, 0
    %180 = vmatprep.subr.mxu0 0.0
    %181 = vmatpush1.msra.mxu0 %v145
    %182 = vmatprep.subr.mxu0 0.0
    %183 = vmatpush1.msra.mxu0 %v150
    %184 = vmatprep.subr.mxu0 0.0
    %185 = vmatpush1.msra.mxu0 %v155
    %186 = vmatprep.subr.mxu0 0.0
    %187 = vmatpush1.msra.mxu0 %v160
    %188 = vmatprep.subr.mxu0 0.0
    %189 = vmatpush1.msra.mxu0 0.0
    %190 = vmatprep.subr.mxu0 0.0
    %191 = vmatpush1.msra.mxu0 0.0
    %192 = vmatprep.subr.mxu0 0.0
    %193 = vmatpush1.msra.mxu0 0.0
    %194 = vmatprep.subr.mxu0 0.0
    %195 = vmatpush1.msra.mxu0 0.0
    %196 = vmatprep.subr.mxu0 0.0
    %197 = vmatpush1.msra.mxu0 0.0
    %198 = vmatprep.subr.mxu0 0.0
    %199 = vmatpush1.msra.mxu0 0.0
    %200 = vmatprep.subr.mxu0 0.0
    %201 = vmatpush1.msra.mxu0 0.0
    %202 = vmatprep.subr.mxu0 0.0
    %203 = vmatpush1.msra.mxu0 0.0
    %204 = vmatprep.subr.mxu0 0.0
    %205 = vmatpush1.msra.mxu0 0.0
    %206 = vmatprep.subr.mxu0 0.0
    %207 = vmatpush1.msra.mxu0 0.0
    %208 = vmatprep.subr.mxu0 0.0
    %209 = vmatpush1.msra.mxu0 0.0
    %210 = vmatprep.subr.mxu0 0.0
    %211 = vmatpush1.msra.mxu0 0.0
    %212 = vmatprep.subr.mxu0 0.0
    %213 = vmatpush1.msra.mxu0 0.0
    %214 = vmatprep.subr.mxu0 0.0
    %215 = vmatpush1.msra.mxu0 0.0
    %216 = vmatprep.subr.mxu0 0.0
    %217 = vmatpush1.msra.mxu0 0.0
    %218 = vmatprep.subr.mxu0 0.0
    %219 = vmatpush1.msra.mxu0 0.0
    %220 = vmatprep.subr.mxu0 0.0
    %221 = vmatpush1.msra.mxu0 0.0
    %222 = vmatprep.subr.mxu0 0.0
    %223 = vmatpush1.msra.mxu0 0.0
    %224 = vmatprep.subr.mxu0 0.0
    %225 = vmatpush1.msra.mxu0 0.0
    %226 = vmatprep.subr.mxu0 0.0
    %227 = vmatpush1.msra.mxu0 0.0
    %228 = vmatprep.subr.mxu0 0.0
    %229 = vmatpush1.msra.mxu0 0.0
    %230 = vmatprep.subr.mxu0 0.0
    %231 = vmatpush1.msra.mxu0 0.0
    %232 = vmatprep.subr.mxu0 0.0
    %233 = vmatpush1.msra.mxu0 0.0
    %234 = vmatprep.subr.mxu0 0.0
    %235 = vmatpush1.msra.mxu0 0.0
    %236 = vmatprep.subr.mxu0 0.0
    %237 = vmatpush1.msra.mxu0 0.0
    %238 = vmatprep.subr.mxu0 0.0
    %239 = vmatpush1.msra.mxu0 0.0
    %240 = vmatprep.subr.mxu0 0.0
    %241 = vmatpush1.msra.mxu0 0.0
    %242 = vmatprep.subr.mxu0 0.0
    %243 = vmatpush1.msra.mxu0 0.0
    %244 = vmatprep.mubr.f32.mxu0 0.0
    %245 = vmatmul.mubr.f32.gmra.mrb[0].mxu0 %v169
    %v246 = vpop.f32.mrb[0].mxu0
    %v247 = vadd.f32 0.0, %v246
    %v248 = vpop.f32.mrb[0].mxu0
    %249 = vmatprep.mubr.f32.mxu0 0.0
    %250 = vmatmul.mubr.f32.gmra.mrb[0].mxu0 %v172
    %v251 = vpop.f32.mrb[0].mxu0
    %v252 = vadd.f32 0.0, %v251
    %v253 = vpop.f32.mrb[0].mxu0
    %254 = vmatprep.mubr.f32.mxu0 0.0
    %255 = vmatmul.mubr.f32.gmra.mrb[0].mxu0 %v175
    %v256 = vpop.f32.mrb[0].mxu0
    %v257 = vadd.f32 0.0, %v256
    %v258 = vpop.f32.mrb[0].mxu0
    %259 = vmatprep.mubr.f32.mxu0 0.0
    %260 = vmatmul.mubr.f32.gmra.mrb[0].mxu0 %v178
    %v261 = vpop.f32.mrb[0].mxu0
    %v262 = vadd.f32 0.0, %v261
    %v263 = vpop.f32.mrb[0].mxu0
    %264 = vdwg.mxu0
    %v265 = vld [vmem:[#allocation2 + $0x80] sm:$0xff]
    %v266 = vld [vmem:[#allocation2 + $0x88] sm:$0xff]
    %v267 = vld [vmem:[#allocation2 + $0x90] sm:$0xff]
    %v268 = vld [vmem:[#allocation2 + $0x98] sm:$0xff]
    %v269 = vld [vmem:[#allocation2 + $0xa0] sm:$0xff]
    %v270 = vld [vmem:[#allocation2 + $0xa8] sm:$0xff]
    %v271 = vld [vmem:[#allocation2 + $0xb0] sm:$0xff]
    %v272 = vld [vmem:[#allocation2 + $0xb8] sm:$0xff]
    %v273 = vlaneseq
    %v274 = vshrl.u32 %v273, 7
    %v275 = vadd.s32 %v274, 8
    %v276 = vadd.s32 %v274, 16
    %v277 = vadd.s32 %v274, 24
    %vm278 = vcmp.lt.s32.totalorder %v274, 16
    %vm279 = vcmp.lt.s32.totalorder %v275, 16
    %vm280 = vcmp.lt.s32.totalorder %v276, 16
    %vm281 = vcmp.lt.s32.totalorder %v277, 16
    %v282 = vld [vmem:[%s3] sm:$0x1]
    %v283 = vld [vmem:[%s3 + $0x1] sm:$0x1]
    %v284 = vlaneseq
    %v285 = vshrl.u32 %v284, 7
    %v286 = vsub.s32 0, %v285
    %v287 = vrot.slane %v282, %v286
    %v288 = vlaneseq
    %v289 = vshrl.u32 %v288, 7
    %v290 = vsub.s32 0, %v289
    %v291 = vrot.slane %v283, %v290
    %v292 = vsel %vm278, %v287, %v291
    %v293 = vsel %vm279, %v287, %v291
    %v294 = vsel %vm280, %v287, %v291
    %v295 = vsel %vm281, %v287, %v291
    %vm296 = vcmask 523264
    %v298 = vsel %vm296, %v247, 0
    %v301 = vsel %vm296, %v252, 0
    %v304 = vsel %vm296, %v257, 0
    %v307 = vsel %vm296, %v262, 0
    %309 = vmatprep.subr.mxu0 0.0
    %310 = vmatpush1.msra.mxu0 %v265
    %311 = vmatprep.subr.mxu0 0.0
    %312 = vmatpush1.msra.mxu0 %v266
    %313 = vmatprep.subr.mxu0 0.0
    %314 = vmatpush1.msra.mxu0 %v267
    %315 = vmatprep.subr.mxu0 0.0
    %316 = vmatpush1.msra.mxu0 %v268
    %317 = vmatprep.subr.mxu0 0.0
    %318 = vmatpush1.msra.mxu0 %v269
    %319 = vmatprep.subr.mxu0 0.0
    %320 = vmatpush1.msra.mxu0 %v270
    %321 = vmatprep.subr.mxu0 0.0
    %322 = vmatpush1.msra.mxu0 %v271
    %323 = vmatprep.subr.mxu0 0.0
    %324 = vmatpush1.msra.mxu0 %v272
    %325 = vmatprep.subr.mxu0 0.0
    %326 = vmatpush1.msra.mxu0 0.0
    %327 = vmatprep.subr.mxu0 0.0
    %328 = vmatpush1.msra.mxu0 0.0
    %329 = vmatprep.subr.mxu0 0.0
    %330 = vmatpush1.msra.mxu0 0.0
    %331 = vmatprep.subr.mxu0 0.0
    %332 = vmatpush1.msra.mxu0 0.0
    %333 = vmatprep.subr.mxu0 0.0
    %334 = vmatpush1.msra.mxu0 0.0
    %335 = vmatprep.subr.mxu0 0.0
    %336 = vmatpush1.msra.mxu0 0.0
    %337 = vmatprep.subr.mxu0 0.0
    %338 = vmatpush1.msra.mxu0 0.0
    %339 = vmatprep.subr.mxu0 0.0
    %340 = vmatpush1.msra.mxu0 0.0
    %341 = vmatprep.subr.mxu0 0.0
    %342 = vmatpush1.msra.mxu0 0.0
    %343 = vmatprep.subr.mxu0 0.0
    %344 = vmatpush1.msra.mxu0 0.0
    %345 = vmatprep.subr.mxu0 0.0
    %346 = vmatpush1.msra.mxu0 0.0
    %347 = vmatprep.subr.mxu0 0.0
    %348 = vmatpush1.msra.mxu0 0.0
    %349 = vmatprep.subr.mxu0 0.0
    %350 = vmatpush1.msra.mxu0 0.0
    %351 = vmatprep.subr.mxu0 0.0
    %352 = vmatpush1.msra.mxu0 0.0
    %353 = vmatprep.subr.mxu0 0.0
    %354 = vmatpush1.msra.mxu0 0.0
    %355 = vmatprep.subr.mxu0 0.0
    %356 = vmatpush1.msra.mxu0 0.0
    %357 = vmatprep.subr.mxu0 0.0
    %358 = vmatpush1.msra.mxu0 0.0
    %359 = vmatprep.subr.mxu0 0.0
    %360 = vmatpush1.msra.mxu0 0.0
    %361 = vmatprep.subr.mxu0 0.0
    %362 = vmatpush1.msra.mxu0 0.0
    %363 = vmatprep.subr.mxu0 0.0
    %364 = vmatpush1.msra.mxu0 0.0
    %365 = vmatprep.subr.mxu0 0.0
    %366 = vmatpush1.msra.mxu0 0.0
    %367 = vmatprep.subr.mxu0 0.0
    %368 = vmatpush1.msra.mxu0 0.0
    %369 = vmatprep.subr.mxu0 0.0
    %370 = vmatpush1.msra.mxu0 0.0
    %371 = vmatprep.subr.mxu0 0.0
    %372 = vmatpush1.msra.mxu0 0.0
    %373 = vmatprep.mubr.f32.mxu0 0.0
    %374 = vmatmul.mubr.f32.gmra.mrb[0].mxu0 %v298
    %v375 = vpop.f32.mrb[0].mxu0
    %v376 = vadd.f32 %v292, %v375
    %v377 = vpop.f32.mrb[0].mxu0
    %378 = vmatprep.mubr.f32.mxu0 0.0
    %379 = vmatmul.mubr.f32.gmra.mrb[0].mxu0 %v301
    %v380 = vpop.f32.mrb[0].mxu0
    %v381 = vadd.f32 %v293, %v380
    %v382 = vpop.f32.mrb[0].mxu0
    %383 = vmatprep.mubr.f32.mxu0 0.0
    %384 = vmatmul.mubr.f32.gmra.mrb[0].mxu0 %v304
    %v385 = vpop.f32.mrb[0].mxu0
    %v386 = vadd.f32 %v294, %v385
    %v387 = vpop.f32.mrb[0].mxu0
    %388 = vmatprep.mubr.f32.mxu0 0.0
    %389 = vmatmul.mubr.f32.gmra.mrb[0].mxu0 %v307
    %v390 = vpop.f32.mrb[0].mxu0
    %v391 = vadd.f32 %v295, %v390
    %v392 = vpop.f32.mrb[0].mxu0
    %393 = vdwg.mxu0
    %v394 = vmax.f32 %v376, 0.0
    %v395 = vmax.f32 %v381, 0.0
    %v396 = vmax.f32 %v386, 0.0
    %v397 = vmax.f32 %v391, 0.0
    %v398 = vsel %vm167, %v394, 0.0
    %v399 = vrot.slane %v398, 4
    %v400 = vadd.f32 %v398, %v399
    %v401 = vrot.slane %v400, 2
    %v402 = vadd.f32 %v400, %v401
    %v403 = vrot.slane %v402, 1
    %v404 = vadd.f32 %v402, %v403
    %v405 = vsel %vm167, %v395, 0.0
    %v406 = vrot.slane %v405, 4
    %v407 = vadd.f32 %v405, %v406
    %v408 = vrot.slane %v407, 2
    %v409 = vadd.f32 %v407, %v408
    %v410 = vrot.slane %v409, 1
    %v411 = vadd.f32 %v409, %v410
    %v412 = vrcp.pop 8.0
    %v413 = vmul.f32 %v404, %v412
    %v414 = vmul.f32 %v411, %v412
    %v415 = vld [vmem:[#allocation2 + $0xc0] sm:$0xff]
    %v416 = vld [vmem:[#allocation2 + $0xc8] sm:$0xff]
    %v417 = vld [vmem:[#allocation2 + $0xd0] sm:$0xff]
    %v418 = vld [vmem:[#allocation2 + $0xd8] sm:$0xff]
    %v419 = vld [vmem:[%s3 + $0x2] sm:$0x1]
    %v420 = vlaneseq
    %v421 = vshrl.u32 %v420, 7
    %v422 = vsub.s32 0, %v421
    %v423 = vrot.slane %v419, %v422
    %vm426 = vcmask 1041409
    %v427 = vsel %vm426, %v414, %v413
    %v428 = vsel %vm167, %v427, 0
    %430 = vmatprep.subr.mxu0 0.0
    %431 = vmatpush1.msra.mxu0 %v415
    %432 = vmatprep.subr.mxu0 0.0
    %433 = vmatpush1.msra.mxu0 %v416
    %434 = vmatprep.subr.mxu0 0.0
    %435 = vmatpush1.msra.mxu0 %v417
    %436 = vmatprep.subr.mxu0 0.0
    %437 = vmatpush1.msra.mxu0 %v418
    %438 = vmatprep.subr.mxu0 0.0
    %439 = vmatpush1.msra.mxu0 0.0
    %440 = vmatprep.subr.mxu0 0.0
    %441 = vmatpush1.msra.mxu0 0.0
    %442 = vmatprep.subr.mxu0 0.0
    %443 = vmatpush1.msra.mxu0 0.0
    %444 = vmatprep.subr.mxu0 0.0
    %445 = vmatpush1.msra.mxu0 0.0
    %446 = vmatprep.subr.mxu0 0.0
    %447 = vmatpush1.msra.mxu0 0.0
    %448 = vmatprep.subr.mxu0 0.0
    %449 = vmatpush1.msra.mxu0 0.0
    %450 = vmatprep.subr.mxu0 0.0
    %451 = vmatpush1.msra.mxu0 0.0
    %452 = vmatprep.subr.mxu0 0.0
    %453 = vmatpush1.msra.mxu0 0.0
    %454 = vmatprep.subr.mxu0 0.0
    %455 = vmatpush1.msra.mxu0 0.0
    %456 = vmatprep.subr.mxu0 0.0
    %457 = vmatpush1.msra.mxu0 0.0
    %458 = vmatprep.subr.mxu0 0.0
    %459 = vmatpush1.msra.mxu0 0.0
    %460 = vmatprep.subr.mxu0 0.0
    %461 = vmatpush1.msra.mxu0 0.0
    %462 = vmatprep.subr.mxu0 0.0
    %463 = vmatpush1.msra.mxu0 0.0
    %464 = vmatprep.subr.mxu0 0.0
    %465 = vmatpush1.msra.mxu0 0.0
    %466 = vmatprep.subr.mxu0 0.0
    %467 = vmatpush1.msra.mxu0 0.0
    %468 = vmatprep.subr.mxu0 0.0
    %469 = vmatpush1.msra.mxu0 0.0
    %470 = vmatprep.subr.mxu0 0.0
    %471 = vmatpush1.msra.mxu0 0.0
    %472 = vmatprep.subr.mxu0 0.0
    %473 = vmatpush1.msra.mxu0 0.0
    %474 = vmatprep.subr.mxu0 0.0
    %475 = vmatpush1.msra.mxu0 0.0
    %476 = vmatprep.subr.mxu0 0.0
    %477 = vmatpush1.msra.mxu0 0.0
    %478 = vmatprep.subr.mxu0 0.0
    %479 = vmatpush1.msra.mxu0 0.0
    %480 = vmatprep.subr.mxu0 0.0
    %481 = vmatpush1.msra.mxu0 0.0
    %482 = vmatprep.subr.mxu0 0.0
    %483 = vmatpush1.msra.mxu0 0.0
    %484 = vmatprep.subr.mxu0 0.0
    %485 = vmatpush1.msra.mxu0 0.0
    %486 = vmatprep.subr.mxu0 0.0
    %487 = vmatpush1.msra.mxu0 0.0
    %488 = vmatprep.subr.mxu0 0.0
    %489 = vmatpush1.msra.mxu0 0.0
    %490 = vmatprep.subr.mxu0 0.0
    %491 = vmatpush1.msra.mxu0 0.0
    %492 = vmatprep.subr.mxu0 0.0
    %493 = vmatpush1.msra.mxu0 0.0
    %494 = vmatprep.mubr.f32.mxu0 0.0
    %495 = vmatmul.mubr.f32.gmra.mrb[0].mxu0 %v428
    %v496 = vpop.f32.mrb[0].mxu0
    %v497 = vadd.f32 %v423, %v496
    %v498 = vpop.f32.mrb[0].mxu0
    %499 = vdwg.mxu0
    %v500 = vtanh.pop %v497
    %v503 = vunpack.c.l.s4 1966171168
    %v504 = vunpack.c.0.s8 %v503
    %v505 = vlaneseq
    %v506 = vshrl.u32 %v505, 7
    %v507 = vsub.s32 %v504, %v506
    %v508 = vrot.slane %v500, %v507
    %v509 = vcombine.high %v508, %v508
    %v511 = vunpack.c.l.s4 1966171168
    %v512 = vunpack.c.0.s8 %v511
    %v513 = vlaneseq
    %v514 = vshrl.u32 %v513, 7
    %v515 = vsub.s32 %v512, %v514
    %v516 = vrot.slane %v508, %v515
    %v518 = vunpack.c.l.s4 1966171168
    %v519 = vunpack.c.0.s8 %v518
    %v520 = vlaneseq
    %v521 = vshrl.u32 %v520, 7
    %v522 = vsub.s32 %v519, %v521
    %v523 = vrot.slane %v509, %v522
    %v524 = vlaneseq
    %v525 = vshrl.u32 %v524, 7
    %v526 = vsub.s32 0, %v525
    %v527 = vrot.slane %v516, %v526
    %v528 = vlaneseq
    %v529 = vshrl.u32 %v528, 7
    %v530 = vsub.s32 0, %v529
    %v531 = vrot.slane %v523, %v530
    %v534 = vmul.f32 %v394, %v527
    %v535 = vmul.f32 %v395, %v531
    %v536 = vsel %vm167, %v534, 0.0
    %537 = vadd.xlane.f32.xlu0 %v536
    %v538 = vpop.xlane.xlu0 %537
    %v539 = vsel %vm167, %v535, 0.0
    %540 = vadd.xlane.f32.xlu0 %v539
    %v541 = vpop.xlane.xlu0 %540
    %v542 = vmul.f32 %v538, 0.17677669
    %v543 = vmul.f32 %v541, 0.17677669
    %v544 = vrot.slane %v542, 4
    %v545 = vmax.f32 %v542, %v544
    %v546 = vrot.slane %v545, 2
    %v547 = vmax.f32 %v545, %v546
    %v548 = vrot.slane %v547, 1
    %v549 = vmax.f32 %v547, %v548
    %v550 = vrot.slane %v543, 4
    %v551 = vmax.f32 %v543, %v550
    %v552 = vrot.slane %v551, 2
    %v553 = vmax.f32 %v551, %v552
    %v554 = vrot.slane %v553, 1
    %v555 = vmax.f32 %v553, %v554
    %v556 = vsub.f32 %v542, %v549
    %v557 = vsub.f32 %v543, %v555
    %v558 = vmul.f32 %v556, 1.442695
    %v559 = vpow.pop %v558
    %v560 = vmul.f32 %v557, 1.442695
    %v561 = vpow.pop %v560
    %v562 = vrot.slane %v559, 4
    %v563 = vadd.f32 %v559, %v562
    %v564 = vrot.slane %v563, 2
    %v565 = vadd.f32 %v563, %v564
    %v566 = vrot.slane %v565, 1
    %v567 = vadd.f32 %v565, %v566
    %v568 = vrot.slane %v561, 4
    %v569 = vadd.f32 %v561, %v568
    %v570 = vrot.slane %v569, 2
    %v571 = vadd.f32 %v569, %v570
    %v572 = vrot.slane %v571, 1
    %v573 = vadd.f32 %v571, %v572
    %v574 = vrcp.pop %v567
    %v575 = vmul.f32 %v559, %v574
    %v576 = vrcp.pop %v573
    %v577 = vmul.f32 %v561, %v576
    %v578 = vmul.f32 %v575, %v394
    %v579 = vmul.f32 %v577, %v395
    %v580 = vsel %vm167, %v578, 0.0
    %v581 = vrot.slane %v580, 4
    %v582 = vadd.f32 %v580, %v581
    %v583 = vrot.slane %v582, 2
    %v584 = vadd.f32 %v582, %v583
    %v585 = vrot.slane %v584, 1
    %v586 = vadd.f32 %v584, %v585
    %v587 = vsel %vm167, %v579, 0.0
    %v588 = vrot.slane %v587, 4
    %v589 = vadd.f32 %v587, %v588
    %v590 = vrot.slane %v589, 2
    %v591 = vadd.f32 %v589, %v590
    %v592 = vrot.slane %v591, 1
    %v593 = vadd.f32 %v591, %v592
    %v594 = vmul.f32 %v396, %v586
    %v595 = vmul.f32 %v397, %v593
    %v596 = vsel %vm167, %v594, 0.0
    %597 = vadd.xlane.f32.xlu0 %v596
    %v598 = vpop.xlane.xlu0 %597
    %v599 = vsel %vm167, %v595, 0.0
    %600 = vadd.xlane.f32.xlu0 %v599
    %v601 = vpop.xlane.xlu0 %600
    %v602 = vmul.f32 %v598, 0.17677669
    %v603 = vmul.f32 %v601, 0.17677669
    %v604 = vrot.slane %v602, 4
    %v605 = vmax.f32 %v602, %v604
    %v606 = vrot.slane %v605, 2
    %v607 = vmax.f32 %v605, %v606
    %v608 = vrot.slane %v607, 1
    %v609 = vmax.f32 %v607, %v608
    %v610 = vrot.slane %v603, 4
    %v611 = vmax.f32 %v603, %v610
    %v612 = vrot.slane %v611, 2
    %v613 = vmax.f32 %v611, %v612
    %v614 = vrot.slane %v613, 1
    %v615 = vmax.f32 %v613, %v614
    %v616 = vsub.f32 %v602, %v609
    %v617 = vsub.f32 %v603, %v615
    %v618 = vmul.f32 %v616, 1.442695
    %v619 = vpow.pop %v618
    %v620 = vmul.f32 %v617, 1.442695
    %v621 = vpow.pop %v620
    %v622 = vrot.slane %v619, 4
    %v623 = vadd.f32 %v619, %v622
    %v624 = vrot.slane %v623, 2
    %v625 = vadd.f32 %v623, %v624
    %v626 = vrot.slane %v625, 1
    %v627 = vadd.f32 %v625, %v626
    %v628 = vrot.slane %v621, 4
    %v629 = vadd.f32 %v621, %v628
    %v630 = vrot.slane %v629, 2
    %v631 = vadd.f32 %v629, %v630
    %v632 = vrot.slane %v631, 1
    %v633 = vadd.f32 %v631, %v632
    %v634 = vrcp.pop %v627
    %v635 = vmul.f32 %v619, %v634
    %v636 = vrcp.pop %v633
    %v637 = vmul.f32 %v621, %v636
    %v638 = vmul.f32 %v635, %v396
    %v639 = vmul.f32 %v637, %v397
    %v640 = vsel %vm167, %v638, 0.0
    %v641 = vrot.slane %v640, 4
    %v642 = vadd.f32 %v640, %v641
    %v643 = vrot.slane %v642, 2
    %v644 = vadd.f32 %v642, %v643
    %v645 = vrot.slane %v644, 1
    %v646 = vadd.f32 %v644, %v645
    %v647 = vsel %vm167, %v639, 0.0
    %v648 = vrot.slane %v647, 4
    %v649 = vadd.f32 %v647, %v648
    %v650 = vrot.slane %v649, 2
    %v651 = vadd.f32 %v649, %v650
    %v652 = vrot.slane %v651, 1
    %v653 = vadd.f32 %v651, %v652
    %v656 = vsel %vm426, %v653, %v646
    %658 = vrot.lane.b32.xlu0 %v500, 32
    %v659 = vpop.permute.xlu0 %658
    %v661 = vsel %vm167, %v656, %v659
    %v662 = vld [vmem:[#allocation2 + $0xe0] sm:$0xff]
    %v663 = vld [vmem:[#allocation2 + $0xe8] sm:$0xff]
    %v664 = vld [vmem:[#allocation2 + $0xf0] sm:$0xff]
    %v665 = vld [vmem:[#allocation2 + $0xf8] sm:$0xff]
    %v666 = vld [vmem:[#allocation2 + $0x100] sm:$0xff]
    %v667 = vld [vmem:[#allocation2 + $0x108] sm:$0xff]
    %v668 = vld [vmem:[#allocation2 + $0x110] sm:$0xff]
    %v669 = vld [vmem:[#allocation2 + $0x118] sm:$0xff]
    %v670 = vld [vmem:[%s3 + $0x3] sm:$0x1]
    %v671 = vlaneseq
    %v672 = vshrl.u32 %v671, 7
    %v673 = vsub.s32 0, %v672
    %v674 = vrot.slane %v670, %v673
    %v676 = vsel %vm296, %v661, 0
    %678 = vmatprep.subr.mxu0 0.0
    %679 = vmatpush1.msra.mxu0 %v662
    %680 = vmatprep.subr.mxu0 0.0
    %681 = vmatpush1.msra.mxu0 %v663
    %682 = vmatprep.subr.mxu0 0.0
    %683 = vmatpush1.msra.mxu0 %v664
    %684 = vmatprep.subr.mxu0 0.0
    %685 = vmatpush1.msra.mxu0 %v665
    %686 = vmatprep.subr.mxu0 0.0
    %687 = vmatpush1.msra.mxu0 %v666
    %688 = vmatprep.subr.mxu0 0.0
    %689 = vmatpush1.msra.mxu0 %v667
    %690 = vmatprep.subr.mxu0 0.0
    %691 = vmatpush1.msra.mxu0 %v668
    %692 = vmatprep.subr.mxu0 0.0
    %693 = vmatpush1.msra.mxu0 %v669
    %694 = vmatprep.subr.mxu0 0.0
    %695 = vmatpush1.msra.mxu0 0.0
    %696 = vmatprep.subr.mxu0 0.0
    %697 = vmatpush1.msra.mxu0 0.0
    %698 = vmatprep.subr.mxu0 0.0
    %699 = vmatpush1.msra.mxu0 0.0
    %700 = vmatprep.subr.mxu0 0.0
    %701 = vmatpush1.msra.mxu0 0.0
    %702 = vmatprep.subr.mxu0 0.0
    %703 = vmatpush1.msra.mxu0 0.0
    %704 = vmatprep.subr.mxu0 0.0
    %705 = vmatpush1.msra.mxu0 0.0
    %706 = vmatprep.subr.mxu0 0.0
    %707 = vmatpush1.msra.mxu0 0.0
    %708 = vmatprep.subr.mxu0 0.0
    %709 = vmatpush1.msra.mxu0 0.0
    %710 = vmatprep.subr.mxu0 0.0
    %711 = vmatpush1.msra.mxu0 0.0
    %712 = vmatprep.subr.mxu0 0.0
    %713 = vmatpush1.msra.mxu0 0.0
    %714 = vmatprep.subr.mxu0 0.0
    %715 = vmatpush1.msra.mxu0 0.0
    %716 = vmatprep.subr.mxu0 0.0
    %717 = vmatpush1.msra.mxu0 0.0
    %718 = vmatprep.subr.mxu0 0.0
    %719 = vmatpush1.msra.mxu0 0.0
    %720 = vmatprep.subr.mxu0 0.0
    %721 = vmatpush1.msra.mxu0 0.0
    %722 = vmatprep.subr.mxu0 0.0
    %723 = vmatpush1.msra.mxu0 0.0
    %724 = vmatprep.subr.mxu0 0.0
    %725 = vmatpush1.msra.mxu0 0.0
    %726 = vmatprep.subr.mxu0 0.0
    %727 = vmatpush1.msra.mxu0 0.0
    %728 = vmatprep.subr.mxu0 0.0
    %729 = vmatpush1.msra.mxu0 0.0
    %730 = vmatprep.subr.mxu0 0.0
    %731 = vmatpush1.msra.mxu0 0.0
    %732 = vmatprep.subr.mxu0 0.0
    %733 = vmatpush1.msra.mxu0 0.0
    %734 = vmatprep.subr.mxu0 0.0
    %735 = vmatpush1.msra.mxu0 0.0
    %736 = vmatprep.subr.mxu0 0.0
    %737 = vmatpush1.msra.mxu0 0.0
    %738 = vmatprep.subr.mxu0 0.0
    %739 = vmatpush1.msra.mxu0 0.0
    %740 = vmatprep.subr.mxu0 0.0
    %741 = vmatpush1.msra.mxu0 0.0
    %742 = vmatprep.mubr.f32.mxu0 0.0
    %743 = vmatmul.mubr.f32.gmra.mrb[0].mxu0 %v676
    %v744 = vpop.f32.mrb[0].mxu0
    %v745 = vadd.f32 %v674, %v744
    %v746 = vpop.f32.mrb[0].mxu0
    %747 = vdwg.mxu0
    %v748 = vmax.f32 %v745, 0.0
    %v749 = vld [vmem:[#allocation2 + $0x120] sm:$0xff]
    %v750 = vld [vmem:[#allocation2 + $0x128] sm:$0xff]
    %v751 = vld [vmem:[#allocation2 + $0x130] sm:$0xff]
    %v752 = vld [vmem:[#allocation2 + $0x138] sm:$0xff]
    %v753 = vld [vmem:[#allocation2 + $0x140] sm:$0xff]
    %v754 = vld [vmem:[#allocation2 + $0x148] sm:$0xff]
    %v755 = vld [vmem:[#allocation2 + $0x150] sm:$0xff]
    %v756 = vld [vmem:[#allocation2 + $0x158] sm:$0xff]
    %v757 = vld [vmem:[%s3 + $0x4] sm:$0x1]
    %v758 = vlaneseq
    %v759 = vshrl.u32 %v758, 7
    %v760 = vsub.s32 0, %v759
    %v761 = vrot.slane %v757, %v760
    %v763 = vsel %vm296, %v748, 0
    %765 = vmatprep.subr.mxu0 0.0
    %766 = vmatpush1.msra.mxu0 %v749
    %767 = vmatprep.subr.mxu0 0.0
    %768 = vmatpush1.msra.mxu0 %v750
    %769 = vmatprep.subr.mxu0 0.0
    %770 = vmatpush1.msra.mxu0 %v751
    %771 = vmatprep.subr.mxu0 0.0
    %772 = vmatpush1.msra.mxu0 %v752
    %773 = vmatprep.subr.mxu0 0.0
    %774 = vmatpush1.msra.mxu0 %v753
    %775 = vmatprep.subr.mxu0 0.0
    %776 = vmatpush1.msra.mxu0 %v754
    %777 = vmatprep.subr.mxu0 0.0
    %778 = vmatpush1.msra.mxu0 %v755
    %779 = vmatprep.subr.mxu0 0.0
    %780 = vmatpush1.msra.mxu0 %v756
    %781 = vmatprep.subr.mxu0 0.0
    %782 = vmatpush1.msra.mxu0 0.0
    %783 = vmatprep.subr.mxu0 0.0
    %784 = vmatpush1.msra.mxu0 0.0
    %785 = vmatprep.subr.mxu0 0.0
    %786 = vmatpush1.msra.mxu0 0.0
    %787 = vmatprep.subr.mxu0 0.0
    %788 = vmatpush1.msra.mxu0 0.0
    %789 = vmatprep.subr.mxu0 0.0
    %790 = vmatpush1.msra.mxu0 0.0
    %791 = vmatprep.subr.mxu0 0.0
    %792 = vmatpush1.msra.mxu0 0.0
    %793 = vmatprep.subr.mxu0 0.0
    %794 = vmatpush1.msra.mxu0 0.0
    %795 = vmatprep.subr.mxu0 0.0
    %796 = vmatpush1.msra.mxu0 0.0
    %797 = vmatprep.subr.mxu0 0.0
    %798 = vmatpush1.msra.mxu0 0.0
    %799 = vmatprep.subr.mxu0 0.0
    %800 = vmatpush1.msra.mxu0 0.0
    %801 = vmatprep.subr.mxu0 0.0
    %802 = vmatpush1.msra.mxu0 0.0
    %803 = vmatprep.subr.mxu0 0.0
    %804 = vmatpush1.msra.mxu0 0.0
    %805 = vmatprep.subr.mxu0 0.0
    %806 = vmatpush1.msra.mxu0 0.0
    %807 = vmatprep.subr.mxu0 0.0
    %808 = vmatpush1.msra.mxu0 0.0
    %809 = vmatprep.subr.mxu0 0.0
    %810 = vmatpush1.msra.mxu0 0.0
    %811 = vmatprep.subr.mxu0 0.0
    %812 = vmatpush1.msra.mxu0 0.0
    %813 = vmatprep.subr.mxu0 0.0
    %814 = vmatpush1.msra.mxu0 0.0
    %815 = vmatprep.subr.mxu0 0.0
    %816 = vmatpush1.msra.mxu0 0.0
    %817 = vmatprep.subr.mxu0 0.0
    %818 = vmatpush1.msra.mxu0 0.0
    %819 = vmatprep.subr.mxu0 0.0
    %820 = vmatpush1.msra.mxu0 0.0
    %821 = vmatprep.subr.mxu0 0.0
    %822 = vmatpush1.msra.mxu0 0.0
    %823 = vmatprep.subr.mxu0 0.0
    %824 = vmatpush1.msra.mxu0 0.0
    %825 = vmatprep.subr.mxu0 0.0
    %826 = vmatpush1.msra.mxu0 0.0
    %827 = vmatprep.subr.mxu0 0.0
    %828 = vmatpush1.msra.mxu0 0.0
    %829 = vmatprep.mubr.f32.mxu0 0.0
    %830 = vmatmul.mubr.f32.gmra.mrb[0].mxu0 %v763
    %v831 = vpop.f32.mrb[0].mxu0
    %v832 = vadd.f32 %v761, %v831
    %v833 = vpop.f32.mrb[0].mxu0
    %834 = vdwg.mxu0
    %835 = vst [vmem:[#allocation5] sm:$0x3] %v832
    // Predicated region
    $region22: #{vqa_forward.1} parent=1 // pred_check
      _
    $region23: #{vqa_forward.1} parent=1 // pred_check_branch
      %837 = sbr.rel (0) target = $region25
    $region24: #{vqa_forward.1} parent=1 // pred_region
      %s839 = ssub.s32 32, 32
      %840 = vsyncadd [#allocation4], %s839
      %s842 = sshll.u32 [#allocation5], 4
      %s843 = int_to_ptr.vmem [resolvable:$true] %s842
      %845 = dma.vmem_to_hbm [thread:$0]  %s843, 32, %s4, [#allocation4]
    $region25: #{vqa_forward.1} parent=1 // pred_fallthru
      _
    // Predicated region
    $region26: #{vqa_forward.1} parent=1 // pred_check
      _
    $region27: #{vqa_forward.1} parent=1 // pred_check_branch
      %847 = sbr.rel (0) target = $region29
    $region28: #{vqa_forward.1} parent=1 // pred_region
      %848 = dma.done [#allocation4], 32
    $region29: #{vqa_forward.1} parent=1 // pred_fallthru
      _
    %849 = vsyncpa [#allocation3], 1
    %850 = vsyncpa [#allocation4], 1

</llo_original>
